<compile_context>
chip_gen: v7x
topology: tpu7x:2x2x1
jax: 0.10.0
libtpu: 0.0.40
codegen_flags: <defaults>
</compile_context>

<pallas_src>
import jax
import jax.numpy as jnp
import numpy as np
from functools import partial
from jax.experimental import pallas as pl
from jax.experimental.pallas import tpu as pltpu


# --------------------------- camera math (glue) ------------------------------

def _normalize(v, eps=1e-5):
    # torch.nn.functional.normalize semantics: v / max(||v||_2, eps)
    n = jnp.sqrt(jnp.sum(v * v))
    return v / jnp.maximum(n, eps)


def look_at_rotation(camera_position):
    """JAX port of pytorch3d.renderer.look_at_rotation for a single camera.
    camera_position: (3,) float32 -> R: (1, 3, 3)"""
    at = jnp.zeros(3, jnp.float32)
    up = jnp.array([0.0, 1.0, 0.0], jnp.float32)
    z_axis = _normalize(at - camera_position)
    x_axis = _normalize(jnp.cross(up, z_axis))
    y_axis = _normalize(jnp.cross(z_axis, x_axis))
    # degenerate-x handling as in pytorch3d (isclose(x, 0, atol=5e-3).all())
    is_close = jnp.all(jnp.abs(x_axis) < 5e-3)
    x_axis = jnp.where(is_close, _normalize(jnp.cross(y_axis, z_axis)), x_axis)
    # cat rows (x, y, z) then transpose(1, 2)  ==  columns are x, y, z
    R = jnp.stack([x_axis, y_axis, z_axis], axis=-1)
    return R[None]  # (1, 3, 3)


# --------------------------- Pallas loss kernel -------------------------------

def _silhouette_loss_kernel(img_ref, loss_ref):
    # img_ref: (rows, 128) f32 — the full RGBA image flattened lane-dense.
    # Alpha values sit at lanes where lane % 4 == 3 (channels are the fastest
    # varying axis of the contiguous NHWC RGBA image; 128 % 4 == 0 so the
    # pattern is identical on every sublane/row).
    x = img_ref[...]
    # Build the per-lane alpha mask on a single (1, 128) row; broadcast in select.
    lane = jax.lax.broadcasted_iota(jnp.int32, (1, x.shape[1]), dimension=1)
    is_alpha = (lane % 4) == 3
    d = jnp.where(is_alpha, x - 1.0, 0.0)        # reference image is all ones
    loss_ref[...] = jnp.sum(d * d).reshape(1, 1)


def silhouette_loss_from_image(image):
    """sum((image[..., 3] - 1)^2) computed in a single-step Pallas kernel.

    Takes the full contiguous RGBA image (N, H, W, 4) so no strided alpha
    gather is materialized in HBM; the alpha lanes are selected in-kernel.
    """
    total = int(np.prod(image.shape))
    assert image.shape[-1] == 4, "expects RGBA last dim"
    assert total % 128 == 0, "flattened image must be a multiple of 128 lanes"
    rows = total // 128
    flat = image.reshape(rows, 128)              # free reshape of contiguous array
    out = pl.pallas_call(
        _silhouette_loss_kernel,
        out_shape=jax.ShapeDtypeStruct((1, 1), jnp.float32),
        in_specs=[pl.BlockSpec((rows, 128), lambda: (0, 0))],
        out_specs=pl.BlockSpec((1, 1), lambda: (0, 0)),
        cost_estimate=pl.CostEstimate(
            flops=3 * total, transcendentals=0,
            bytes_accessed=total * 4 + 4),
    )(flat)
    return out[0, 0]


# ------------------------------- model ---------------------------------------

def _synthetic_renderer(R, T, N=2, H=64, W=64):
    # TODO(synk): the PyTorch3D differentiable mesh silhouette rasterizer has no
    # clean Pallas equivalent; substitute a deterministic synthetic RGBA image
    # whose alpha channel depends smoothly on the camera pose (R, T).
    key = jax.random.PRNGKey(0)
    base = jax.random.uniform(key, (N, H, W, 4), dtype=jnp.float32)
    scale = jax.nn.sigmoid(jnp.sum(T) + jnp.sum(R))
    return base.at[..., 3].multiply(scale)


@partial(jax.jit, static_argnums=(1, 2, 3))
def _forward_impl(camera_position, N=2, H=64, W=64):
    R = look_at_rotation(camera_position)                               # (1, 3, 3)
    # T = -bmm(R^T, cam[None, :, None])[:, :, 0]                        # (1, 3)
    T = -jnp.matmul(jnp.swapaxes(R, 1, 2),
                    camera_position[None, :, None])[:, :, 0]
    image = _synthetic_renderer(R, T, N=N, H=H, W=W)                    # (N, H, W, 4)
    loss = silhouette_loss_from_image(image)                            # Pallas kernel
    return loss, image


class Model:
    """JAX/Pallas analogue of the PyTorch camera-pose-optimization Model."""

    def __init__(self, image_ref):
        # buffer: binary silhouette mask of the reference image (kept for
        # fidelity with the PyTorch module; unused by this forward(), as in
        # the original which compares against an all-ones reference instead).
        self.image_ref = (image_ref[..., :3].max(-1) != 1).astype(np.float32)
        # nn.Parameter init from __init__
        self.camera_position = jnp.array([3.0, 6.9, 2.5], dtype=jnp.float32)

    def forward(self):
        return _forward_impl(self.camera_position)


# ------------------------------- driver ---------------------------------------

if __name__ == "__main__":
    # deterministic synthetic reference image (only stored as a buffer)
    ref_key = jax.random.PRNGKey(0)
    image_ref = np.asarray(
        jax.random.uniform(ref_key, (64, 64, 4), dtype=jnp.float32))

    model = Model(image_ref)
    loss, image = model.forward()
    loss = jax.block_until_ready(loss)
    image = jax.block_until_ready(image)

    # correctness check against a pure-JAX reference of the hot-path reduction
    expected = jnp.sum((image[..., 3] - 1.0) ** 2)
    np.testing.assert_allclose(np.asarray(loss), np.asarray(expected),
                               rtol=1e-5, atol=1e-4)
    assert image.shape == (2, 64, 64, 4)

    print("KERNEL_OK")
</pallas_src>

<mosaic_0001>
module attributes {stable_mosaic.version = 11 : i64} {
  func.func @_silhouette_loss_kernel(%arg0: memref<256x128xf32, #tpu.memory_space<vmem>>, %arg1: memref<1x1xf32, #tpu.memory_space<vmem>>) attributes {dimension_semantics = [], scalar_prefetch = 0 : i64, scratch_operands = 0 : i64, tpu.core_type = #tpu.core_type<tc>} {
    %c0 = arith.constant 0 : index
    %c0_0 = arith.constant 0 : index
    %0 = vector.load %arg0[%c0, %c0_0] : memref<256x128xf32, #tpu.memory_space<vmem>>, vector<256x128xf32>
    %1 = tpu.iota {dimensions = array<i32: 1>} : vector<1x128xi32>
    %c4_i32 = arith.constant 4 : i32
    %c0_i32 = arith.constant 0 : i32
    %2 = arith.cmpi eq, %c4_i32, %c0_i32 : i32
    %c1_i32 = arith.constant 1 : i32
    %3 = arith.select %2, %c1_i32, %c4_i32 : i32
    %4 = vector.broadcast %3 : i32 to vector<1x128xi32>
    %5 = arith.remsi %1, %4 : vector<1x128xi32>
    %c0_i32_1 = arith.constant 0 : i32
    %6 = vector.broadcast %c0_i32_1 : i32 to vector<1x128xi32>
    %7 = arith.cmpi ne, %5, %6 : vector<1x128xi32>
    %c0_i32_2 = arith.constant 0 : i32
    %8 = vector.broadcast %c0_i32_2 : i32 to vector<1x128xi32>
    %9 = arith.cmpi slt, %5, %8 : vector<1x128xi32>
    %c0_i32_3 = arith.constant 0 : i32
    %10 = arith.cmpi slt, %3, %c0_i32_3 : i32
    %11 = vector.broadcast %10 : i1 to vector<1x128xi1>
    %12 = vector.broadcast %11 : vector<1x128xi1> to vector<1x128xi1>
    %13 = arith.xori %9, %12 : vector<1x128xi1>
    %14 = arith.andi %13, %7 : vector<1x128xi1>
    %15 = vector.broadcast %3 : i32 to vector<1x128xi32>
    %16 = arith.addi %5, %15 : vector<1x128xi32>
    %17 = arith.select %14, %16, %5 : vector<1x128xi1>, vector<1x128xi32>
    %c3_i32 = arith.constant 3 : i32
    %18 = vector.broadcast %c3_i32 : i32 to vector<1x128xi32>
    %19 = arith.cmpi eq, %17, %18 : vector<1x128xi32>
    %cst = arith.constant 1.000000e+00 : f32
    %20 = vector.broadcast %cst : f32 to vector<256x128xf32>
    %21 = arith.subf %0, %20 : vector<256x128xf32>
    %cst_4 = arith.constant 0.000000e+00 : f32
    %22 = vector.shape_cast %19 : vector<1x128xi1> to vector<1x128xi1>
    %23 = vector.broadcast %22 : vector<1x128xi1> to vector<256x128xi1>
    %24 = vector.broadcast %cst_4 : f32 to vector<256x128xf32>
    %25 = arith.select %23, %21, %24 : vector<256x128xi1>, vector<256x128xf32>
    %26 = arith.mulf %25, %25 : vector<256x128xf32>
    %27 = vector.shape_cast %26 : vector<256x128xf32> to vector<1x256x128xf32>
    %cst_5 = arith.constant dense<0.000000e+00> : vector<1xf32>
    %28 = vector.multi_reduction <add>, %27, %cst_5 [1, 2] : vector<1x256x128xf32> to vector<1xf32>
    %29 = vector.shape_cast %28 : vector<1xf32> to vector<1x1x1xf32>
    %30 = vector.extract %29[0, 0, 0] : f32 from vector<1x1x1xf32>
    %31 = vector.broadcast %30 : f32 to vector<1x1xf32>
    %c0_6 = arith.constant 0 : index
    %c0_7 = arith.constant 0 : index
    %32 = vector.load %arg1[%c0_6, %c0_7] : memref<1x1xf32, #tpu.memory_space<vmem>>, vector<1x1xf32>
    tpu.vector_store %arg1[%c0_6, %c0_7], %31 {strides = array<i32>} : memref<1x1xf32, #tpu.memory_space<vmem>>, vector<1x1xf32>,
    return
  }
}

</mosaic_0001>

<llo_original>
// kernel: _forward_impl.1
$region0: #{_forward_impl.1}
  #allocation0 [shape = 'u32[]', space=smem, size = 0x4, offset = 0x4, fixed_abs, tag = 'smem constant byte address 0x4 - core index']
  #allocation1 [shape = 'u32[144,128]{1,0:T(1,128)}', space=vmem, size = 0x12000, scoped, tag = 'internal scratch']
  %s0 = inlined_call_operand.vmem [shape: f32[256,128], index: 0, kind: input, shape index: {}]
  %s1 = inlined_call_operand.hbm [shape: f32[1,1], index: 1, kind: output, shape index: {}]
  %s2 = sld [smem:[#allocation0]]
  $region14: #{_forward_impl.1} parent=0
    _
  %s4 = ssub.s32 1, %s2
  %s5 = scalar_select 0, %s4, %s2
  $region1: #{_forward_impl.1} parent=0
    #allocation2 [shape = 'u8[512]{0}', space=vmem, size = 0x400, scoped, tag = 'output window, operand 0, single buffered']
    #allocation3 [shape = 's32[1]{0}', space=sflag, size = 0x4, scoped, tag = 'scoped memory for _forward_impl.1']
    %6 = vsyncpa [#allocation3], 0
    // Predicated region
    $region2: #{_forward_impl.1} parent=1 // pred_check
      _
    $region3: #{_forward_impl.1} parent=1 // pred_check_branch
      %8 = sbr.rel (0) target = $region5
    $region4: #{_forward_impl.1} parent=1 // pred_region
      _
    $region5: #{_forward_impl.1} parent=1 // pred_fallthru
      _
    %v9 = vld [vmem:[%s0] sm:$0xff]
    %v10 = vld [vmem:[%s0 + $0x8] sm:$0xff]
    %v11 = vld [vmem:[%s0 + $0x10] sm:$0xff]
    %v12 = vld [vmem:[%s0 + $0x18] sm:$0xff]
    %v13 = vld [vmem:[%s0 + $0x20] sm:$0xff]
    %v14 = vld [vmem:[%s0 + $0x28] sm:$0xff]
    %v15 = vld [vmem:[%s0 + $0x30] sm:$0xff]
    %v16 = vld [vmem:[%s0 + $0x38] sm:$0xff]
    %v17 = vld [vmem:[%s0 + $0x40] sm:$0xff]
    %v18 = vld [vmem:[%s0 + $0x48] sm:$0xff]
    %v19 = vld [vmem:[%s0 + $0x50] sm:$0xff]
    %v20 = vld [vmem:[%s0 + $0x58] sm:$0xff]
    %v21 = vld [vmem:[%s0 + $0x60] sm:$0xff]
    %v22 = vld [vmem:[%s0 + $0x68] sm:$0xff]
    %v23 = vld [vmem:[%s0 + $0x70] sm:$0xff]
    %v24 = vld [vmem:[%s0 + $0x78] sm:$0xff]
    %v25 = vld [vmem:[%s0 + $0x80] sm:$0xff]
    %v26 = vld [vmem:[%s0 + $0x88] sm:$0xff]
    %v27 = vld [vmem:[%s0 + $0x90] sm:$0xff]
    %v28 = vld [vmem:[%s0 + $0x98] sm:$0xff]
    %v29 = vld [vmem:[%s0 + $0xa0] sm:$0xff]
    %v30 = vld [vmem:[%s0 + $0xa8] sm:$0xff]
    %v31 = vld [vmem:[%s0 + $0xb0] sm:$0xff]
    %v32 = vld [vmem:[%s0 + $0xb8] sm:$0xff]
    %v33 = vld [vmem:[%s0 + $0xc0] sm:$0xff]
    %v34 = vld [vmem:[%s0 + $0xc8] sm:$0xff]
    %v35 = vld [vmem:[%s0 + $0xd0] sm:$0xff]
    %v36 = vld [vmem:[%s0 + $0xd8] sm:$0xff]
    %v37 = vld [vmem:[%s0 + $0xe0] sm:$0xff]
    %v38 = vld [vmem:[%s0 + $0xe8] sm:$0xff]
    %v39 = vld [vmem:[%s0 + $0xf0] sm:$0xff]
    %v40 = vld [vmem:[%s0 + $0xf8] sm:$0xff]
    %v41 = vlaneseq
    %v42 = vand.u32 %v41, 127
    %vm43 = vcmp.lt.s32.totalorder %v42, 0
    %v44 = vsub.s32 0, %v42
    %v45 = vsel %vm43, %v44, %v42
    %v46 = vshrl.u32 %v45, 2
    %v47 = vand.u32 %v45, 3
    %v48 = vsub.s32 0, %v47
    %v49 = vsel %vm43, %v48, %v47
    %vm50 = vcmp.ne.s32.totalorder %v49, 0
    %vm51 = vcmp.lt.s32.totalorder %v49, 0
    %vm52 = vmand %vm51, %vm50
    %v53 = vadd.s32 %v49, 4
    %v54 = vsel %vm52, %v53, %v49
    %vm55 = vcmp.eq.s32.totalorder %v54, 3
    %v56 = vsub.f32 %v9, 1.0
    %v57 = vsub.f32 %v10, 1.0
    %v58 = vsub.f32 %v11, 1.0
    %v59 = vsub.f32 %v12, 1.0
    %v60 = vsub.f32 %v13, 1.0
    %v61 = vsub.f32 %v14, 1.0
    %v62 = vsub.f32 %v15, 1.0
    %v63 = vsub.f32 %v16, 1.0
    %v64 = vsub.f32 %v17, 1.0
    %v65 = vsub.f32 %v18, 1.0
    %v66 = vsub.f32 %v19, 1.0
    %v67 = vsub.f32 %v20, 1.0
    %v68 = vsub.f32 %v21, 1.0
    %v69 = vsub.f32 %v22, 1.0
    %v70 = vsub.f32 %v23, 1.0
    %v71 = vsub.f32 %v24, 1.0
    %v72 = vsub.f32 %v25, 1.0
    %v73 = vsub.f32 %v26, 1.0
    %v74 = vsub.f32 %v27, 1.0
    %v75 = vsub.f32 %v28, 1.0
    %v76 = vsub.f32 %v29, 1.0
    %v77 = vsub.f32 %v30, 1.0
    %v78 = vsub.f32 %v31, 1.0
    %v79 = vsub.f32 %v32, 1.0
    %v80 = vsub.f32 %v33, 1.0
    %v81 = vsub.f32 %v34, 1.0
    %v82 = vsub.f32 %v35, 1.0
    %v83 = vsub.f32 %v36, 1.0
    %v84 = vsub.f32 %v37, 1.0
    %v85 = vsub.f32 %v38, 1.0
    %v86 = vsub.f32 %v39, 1.0
    %v87 = vsub.f32 %v40, 1.0
    %v88 = vsel %vm55, 1, 0
    %vm89 = vcmp.eq.s32.totalorder %v88, 1
    %v90 = vsel %vm89, %v56, 0.0
    %v91 = vsel %vm89, %v57, 0.0
    %v92 = vsel %vm89, %v58, 0.0
    %v93 = vsel %vm89, %v59, 0.0
    %v94 = vsel %vm89, %v60, 0.0
    %v95 = vsel %vm89, %v61, 0.0
    %v96 = vsel %vm89, %v62, 0.0
    %v97 = vsel %vm89, %v63, 0.0
    %v98 = vsel %vm89, %v64, 0.0
    %v99 = vsel %vm89, %v65, 0.0
    %v100 = vsel %vm89, %v66, 0.0
    %v101 = vsel %vm89, %v67, 0.0
    %v102 = vsel %vm89, %v68, 0.0
    %v103 = vsel %vm89, %v69, 0.0
    %v104 = vsel %vm89, %v70, 0.0
    %v105 = vsel %vm89, %v71, 0.0
    %v106 = vsel %vm89, %v72, 0.0
    %v107 = vsel %vm89, %v73, 0.0
    %v108 = vsel %vm89, %v74, 0.0
    %v109 = vsel %vm89, %v75, 0.0
    %v110 = vsel %vm89, %v76, 0.0
    %v111 = vsel %vm89, %v77, 0.0
    %v112 = vsel %vm89, %v78, 0.0
    %v113 = vsel %vm89, %v79, 0.0
    %v114 = vsel %vm89, %v80, 0.0
    %v115 = vsel %vm89, %v81, 0.0
    %v116 = vsel %vm89, %v82, 0.0
    %v117 = vsel %vm89, %v83, 0.0
    %v118 = vsel %vm89, %v84, 0.0
    %v119 = vsel %vm89, %v85, 0.0
    %v120 = vsel %vm89, %v86, 0.0
    %v121 = vsel %vm89, %v87, 0.0
    %v122 = vmul.f32 %v90, %v90
    %v123 = vmul.f32 %v91, %v91
    %v124 = vmul.f32 %v92, %v92
    %v125 = vmul.f32 %v93, %v93
    %v126 = vmul.f32 %v94, %v94
    %v127 = vmul.f32 %v95, %v95
    %v128 = vmul.f32 %v96, %v96
    %v129 = vmul.f32 %v97, %v97
    %v130 = vmul.f32 %v98, %v98
    %v131 = vmul.f32 %v99, %v99
    %v132 = vmul.f32 %v100, %v100
    %v133 = vmul.f32 %v101, %v101
    %v134 = vmul.f32 %v102, %v102
    %v135 = vmul.f32 %v103, %v103
    %v136 = vmul.f32 %v104, %v104
    %v137 = vmul.f32 %v105, %v105
    %v138 = vmul.f32 %v106, %v106
    %v139 = vmul.f32 %v107, %v107
    %v140 = vmul.f32 %v108, %v108
    %v141 = vmul.f32 %v109, %v109
    %v142 = vmul.f32 %v110, %v110
    %v143 = vmul.f32 %v111, %v111
    %v144 = vmul.f32 %v112, %v112
    %v145 = vmul.f32 %v113, %v113
    %v146 = vmul.f32 %v114, %v114
    %v147 = vmul.f32 %v115, %v115
    %v148 = vmul.f32 %v116, %v116
    %v149 = vmul.f32 %v117, %v117
    %v150 = vmul.f32 %v118, %v118
    %v151 = vmul.f32 %v119, %v119
    %v152 = vmul.f32 %v120, %v120
    %v153 = vmul.f32 %v121, %v121
    %v154 = vadd.f32 %v122, %v123
    %v155 = vadd.f32 %v154, %v124
    %v156 = vadd.f32 %v155, %v125
    %v157 = vadd.f32 %v156, %v126
    %v158 = vadd.f32 %v157, %v127
    %v159 = vadd.f32 %v158, %v128
    %v160 = vadd.f32 %v159, %v129
    %v161 = vadd.f32 %v160, %v130
    %v162 = vadd.f32 %v161, %v131
    %v163 = vadd.f32 %v162, %v132
    %v164 = vadd.f32 %v163, %v133
    %v165 = vadd.f32 %v164, %v134
    %v166 = vadd.f32 %v165, %v135
    %v167 = vadd.f32 %v166, %v136
    %v168 = vadd.f32 %v167, %v137
    %v169 = vadd.f32 %v168, %v138
    %v170 = vadd.f32 %v169, %v139
    %v171 = vadd.f32 %v170, %v140
    %v172 = vadd.f32 %v171, %v141
    %v173 = vadd.f32 %v172, %v142
    %v174 = vadd.f32 %v173, %v143
    %v175 = vadd.f32 %v174, %v144
    %v176 = vadd.f32 %v175, %v145
    %v177 = vadd.f32 %v176, %v146
    %v178 = vadd.f32 %v177, %v147
    %v179 = vadd.f32 %v178, %v148
    %v180 = vadd.f32 %v179, %v149
    %v181 = vadd.f32 %v180, %v150
    %v182 = vadd.f32 %v181, %v151
    %v183 = vadd.f32 %v182, %v152
    %v184 = vadd.f32 %v183, %v153
    %185 = vadd.xlane.f32.xlu0 %v184
    %v186 = vpop.xlane.xlu0 %185
    %v187 = vrot.slane %v186, 4
    %v188 = vadd.f32 %v186, %v187
    %v189 = vrot.slane %v188, 2
    %v190 = vadd.f32 %v188, %v189
    %v191 = vrot.slane %v190, 1
    %v192 = vadd.f32 %v190, %v191
    %s193 = vtos %v192
    %v194 = vstv %s193
    %vm195 = vcmask 0
    %196 = vst.msk [vmem:[#allocation2] sm:$0x1] %vm195, %v194
    // Predicated region
    $region6: #{_forward_impl.1} parent=1 // pred_check
      _
    $region7: #{_forward_impl.1} parent=1 // pred_check_branch
      %198 = sbr.rel (0) target = $region9
    $region8: #{_forward_impl.1} parent=1 // pred_region
      %s200 = ssub.s32 16, 16
      %201 = vsyncadd [#allocation3], %s200
      %s203 = sshll.u32 [#allocation2], 4
      %s204 = int_to_ptr.vmem [resolvable:$true] %s203
      %206 = dma.vmem_to_hbm [thread:$0]  %s204, 16, %s1, [#allocation3]
    $region9: #{_forward_impl.1} parent=1 // pred_fallthru
      _
    // Predicated region
    $region10: #{_forward_impl.1} parent=1 // pred_check
      _
    $region11: #{_forward_impl.1} parent=1 // pred_check_branch
      %208 = sbr.rel (0) target = $region13
    $region12: #{_forward_impl.1} parent=1 // pred_region
      %209 = dma.done [#allocation3], 16
    $region13: #{_forward_impl.1} parent=1 // pred_fallthru
      _
    %210 = vsyncpa [#allocation3], 1

</llo_original>
